<compile_context>
chip_gen: v6e
topology: v6e:2x2x1
jax: 0.10.0
libtpu: 0.0.40
codegen_flags: <defaults>
</compile_context>

<pallas_src>
import functools

import jax
import jax.numpy as jnp
from jax.experimental import pallas as pl
from jax.experimental.pallas import tpu as pltpu


def _wce_kernel(logits_ref, target_ref, weight_ref, acc_ref, *,
                ignore_index, smooth_factor, hw, tile):
    # logits_ref: (C, T) native dtype; target_ref: (1, T) i32; weight_ref: (1, T)
    # acc_ref:    (1, T) f32 accumulator slab, resident across the inner pixel axis.
    i = pl.program_id(2)

    @pl.when(i == 0)
    def _():
        acc_ref[...] = jnp.zeros_like(acc_ref)

    x = logits_ref[...].astype(jnp.float32)          # (C, T) upcast in-register
    w = weight_ref[...].astype(jnp.float32)          # (1, T)
    tgt = target_ref[...]                            # (1, T) int32
    C = x.shape[0]
    eps = smooth_factor

    # Global pixel offset of lane 0 of this tile (outer chunk * inner tiles + inner).
    base = (pl.program_id(1) * pl.num_programs(2) + i) * tile
    lane = jax.lax.broadcasted_iota(jnp.int32, tgt.shape, 1)       # (1, T)
    # Valid = inside the true pixel count (tail tile has garbage lanes) and not
    # an ignore_index pixel.  All reductions are along C (per-lane), so garbage
    # lanes never contaminate valid lanes; the where-select drops them.
    valid = jnp.logical_and(base + lane < hw, tgt != ignore_index)

    # Numerically-stable log-sum-exp over the class (sublane) axis.
    m = jnp.max(x, axis=0, keepdims=True)                          # (1, T)
    lse = jnp.log(jnp.sum(jnp.exp(x - m), axis=0, keepdims=True))  # (1, T)

    # Fused class reduction (two sublane reduces instead of a full (C,T) coeff mul):
    #   (1-eps)*nll + (eps/C)*smooth = (m + lse) - [(eps/C)*rowsum + (1-eps)*x_tgt]
    cidx = jax.lax.broadcasted_iota(jnp.int32, x.shape, 0)         # (C, T)
    rowsum = jnp.sum(x, axis=0, keepdims=True)                     # (1, T)
    x_tgt = jnp.sum(jnp.where(cidx == tgt, x, 0.0),
                    axis=0, keepdims=True)                         # (1, T)
    wsum = (eps / C) * rowsum + (1.0 - eps) * x_tgt                # (1, T)

    combined = w * ((m + lse) - wsum)                              # (1, T)
    acc_ref[...] += jnp.where(valid, combined, 0.0)


def _vmem_capacity_bytes():
    """Generation-aware physical VMEM size; conservative fallback if unavailable."""
    try:
        return int(pltpu.get_tpu_info().vmem_capacity_bytes)
    except Exception:
        return 64 * 1024 * 1024   # v7x-sized fallback, safe everywhere


def _choose_tile(C, hw, logits_itemsize, weight_itemsize, tile_budget_bytes):
    """Lane-dense pixel tile: up to 32768 lanes (amortizes per-step overhead and
    targets ~1-4 MiB of HBM per step for small C), capped so double-buffered
    inputs + the resident accumulator fit the generation-aware VMEM budget."""
    hw_rounded = pl.cdiv(hw, 128) * 128
    # Double-buffered input streams + (double-buffered) f32 accumulator slab.
    per_lane = 2 * (C * logits_itemsize + 4 + weight_itemsize) + 2 * 4
    cap = tile_budget_bytes // per_lane
    cap = max(128, (cap // 128) * 128)
    return max(128, min(32768, hw_rounded, cap))


def wce_loss(y_pred, y_true, weight, *, smooth_factor=0.1, ignore_index=-100):
    """y_pred: (N, C, H, W) float, y_true: (N, H, W) int, weight: (N, 1, H, W) float."""
    N, C, H, W = y_pred.shape
    HW = H * W
    P = N * HW

    # Free, contiguous reshapes -- no transpose / pad / upcast in the wrapper.
    logits = y_pred.reshape(N, C, HW)
    target = y_true.reshape(N, 1, HW).astype(jnp.int32)
    w = weight.reshape(N, 1, HW)

    vmem_cap = _vmem_capacity_bytes()
    # ~48 MiB on v7x (64 MiB physical), ~96 MiB on v5e/v6e (128 MiB physical).
    vmem_limit = max(32 * 1024 * 1024, min(int(vmem_cap * 0.75), 100 * 1024 * 1024))
    tile = _choose_tile(C, HW,
                        jnp.dtype(logits.dtype).itemsize,
                        jnp.dtype(w.dtype).itemsize,
                        int(vmem_limit * 0.8))
    num_tiles = pl.cdiv(HW, tile)

    # Split the pixel-tile axis into (outer "parallel", inner "arbitrary") so both
    # TensorCores on a megacore part stay busy even when N == 1.  Only applied
    # when the split is exact, so block indices never run past the array.
    num_outer = 2 if (num_tiles % 2 == 0 and num_tiles >= 2) else 1
    num_inner = num_tiles // num_outer

    kernel = functools.partial(_wce_kernel, ignore_index=ignore_index,
                               smooth_factor=float(smooth_factor), hw=HW, tile=tile)

    acc = pl.pallas_call(
        kernel,
        out_shape=jax.ShapeDtypeStruct((N, num_outer, tile), jnp.float32),
        grid_spec=pltpu.PrefetchScalarGridSpec(
            num_scalar_prefetch=0,
            grid=(N, num_outer, num_inner),
            in_specs=[
                pl.BlockSpec((None, C, tile),
                             lambda n, o, i: (n, 0, o * num_inner + i)),
                pl.BlockSpec((None, 1, tile),
                             lambda n, o, i: (n, 0, o * num_inner + i)),
                pl.BlockSpec((None, 1, tile),
                             lambda n, o, i: (n, 0, o * num_inner + i)),
            ],
            # Per-(n, outer-chunk) accumulator slab, resident across the inner axis.
            out_specs=pl.BlockSpec((None, 1, tile), lambda n, o, i: (n, o, 0)),
        ),
        compiler_params=pltpu.CompilerParams(
            dimension_semantics=("parallel", "parallel", "arbitrary"),
            vmem_limit_bytes=vmem_limit,
        ),
    )(logits, target, w)

    # 'mean' reduction divides by the number of elements (N*1*H*W = P); the
    # (1-eps) / (eps/C) factors are already folded into the per-lane sums.
    # NOTE: this matches the PyTorch module (mask-then-.mean()), which differs
    # from nn.CrossEntropyLoss(ignore_index=...) that divides by non-ignored count.
    return jnp.sum(acc) / P


def wce_loss_ref(y_pred, y_true, weight, *, smooth_factor=0.1, ignore_index=-100):
    """Pure-JAX reference matching the PyTorch module exactly."""
    logp = jax.nn.log_softmax(y_pred.astype(jnp.float32), axis=1)
    tgt = y_true[:, None, :, :]
    pad = tgt == ignore_index
    tgt_safe = jnp.where(pad, 0, tgt)
    nll = -jnp.take_along_axis(logp, tgt_safe, axis=1)
    smooth = -jnp.sum(logp, axis=1, keepdims=True)
    nll = jnp.where(pad, 0.0, nll) * weight
    smooth = jnp.where(pad, 0.0, smooth) * weight
    nll_m = jnp.mean(nll)
    smooth_m = jnp.mean(smooth)
    eps_i = smooth_factor / y_pred.shape[1]
    return (1.0 - smooth_factor) * nll_m + eps_i * smooth_m


if __name__ == "__main__":
    key = jax.random.PRNGKey(0)
    k1, k2, k3 = jax.random.split(key, 3)

    N, C, H, W = 2, 4, 16, 16
    ignore_index = -100
    smooth_factor = 0.1

    y_pred = jax.random.normal(k1, (N, C, H, W), dtype=jnp.float32)
    y_true = jax.random.randint(k2, (N, H, W), 0, C, dtype=jnp.int32)
    # sprinkle some ignore_index pixels to exercise the mask
    y_true = y_true.at[0, :2, :].set(ignore_index)
    weight = jax.random.uniform(k3, (N, 1, H, W), dtype=jnp.float32) + 0.5

    loss = wce_loss(y_pred, y_true, weight,
                    smooth_factor=smooth_factor, ignore_index=ignore_index)
    loss = jax.block_until_ready(loss)

    ref = wce_loss_ref(y_pred, y_true, weight,
                       smooth_factor=smooth_factor, ignore_index=ignore_index)
    assert jnp.allclose(loss, ref, rtol=1e-5, atol=1e-5), (loss, ref)

    print("KERNEL_OK")
</pallas_src>

<mosaic_0001>
module attributes {stable_mosaic.version = 11 : i64} {
  func.func @_wce_kernel(%arg0: i32, %arg1: i32, %arg2: i32, %arg3: memref<1x4x256xf32, #tpu.memory_space<vmem>>, %arg4: memref<1x1x256xi32, #tpu.memory_space<vmem>>, %arg5: memref<1x1x256xf32, #tpu.memory_space<vmem>>, %arg6: memref<1x1x256xf32, #tpu.memory_space<vmem>>) attributes {dimension_semantics = [#tpu.dimension_semantics<parallel>, #tpu.dimension_semantics<parallel>, #tpu.dimension_semantics<arbitrary>], iteration_bounds = array<i64: 2, 1, 1>, scalar_prefetch = 0 : i64, scratch_operands = 0 : i64, tpu.core_type = #tpu.core_type<tc>, window_params = [{transform_indices = @transform_0, window_bounds = array<i64: 1, 4, 256>}, {transform_indices = @transform_1, window_bounds = array<i64: 1, 1, 256>}, {transform_indices = @transform_2, window_bounds = array<i64: 1, 1, 256>}, {transform_indices = @transform_3, window_bounds = array<i64: 1, 1, 256>}]} {
    %c0_i32 = arith.constant 0 : i32
    %0 = arith.cmpi eq, %arg2, %c0_i32 : i32
    %1 = arith.extui %0 : i1 to i32
    %c0_i32_0 = arith.constant 0 : i32
    %2 = arith.cmpi ne, %1, %c0_i32_0 : i32
    scf.if %2 {
      %cst_23 = arith.constant 0.000000e+00 : f32
      %53 = vector.broadcast %cst_23 : f32 to vector<1x256xf32>
      %c0_24 = arith.constant 0 : index
      %c0_25 = arith.constant 0 : index
      %c0_26 = arith.constant 0 : index
      %54 = vector.load %arg6[%c0_24, %c0_25, %c0_26] : memref<1x1x256xf32, #tpu.memory_space<vmem>>, vector<1x1x256xf32>
      %55 = vector.shape_cast %54 : vector<1x1x256xf32> to vector<1x256xf32>
      %56 = vector.shape_cast %53 : vector<1x256xf32> to vector<1x1x256xf32>
      tpu.vector_store %arg6[%c0_24, %c0_25, %c0_26], %56 {strides = array<i32>} : memref<1x1x256xf32, #tpu.memory_space<vmem>>, vector<1x1x256xf32>,
    } else {
    }
    %c0 = arith.constant 0 : index
    %c0_1 = arith.constant 0 : index
    %c0_2 = arith.constant 0 : index
    %3 = vector.load %arg3[%c0, %c0_1, %c0_2] : memref<1x4x256xf32, #tpu.memory_space<vmem>>, vector<1x4x256xf32>
    %4 = vector.shape_cast %3 : vector<1x4x256xf32> to vector<4x256xf32>
    %c0_3 = arith.constant 0 : index
    %c0_4 = arith.constant 0 : index
    %c0_5 = arith.constant 0 : index
    %5 = vector.load %arg5[%c0_3, %c0_4, %c0_5] : memref<1x1x256xf32, #tpu.memory_space<vmem>>, vector<1x1x256xf32>
    %6 = vector.shape_cast %5 : vector<1x1x256xf32> to vector<1x256xf32>
    %c0_6 = arith.constant 0 : index
    %c0_7 = arith.constant 0 : index
    %c0_8 = arith.constant 0 : index
    %7 = vector.load %arg4[%c0_6, %c0_7, %c0_8] : memref<1x1x256xi32, #tpu.memory_space<vmem>>, vector<1x1x256xi32>
    %8 = vector.shape_cast %7 : vector<1x1x256xi32> to vector<1x256xi32>
    %c1_i32 = arith.constant 1 : i32
    %9 = arith.muli %arg1, %c1_i32 : i32
    %10 = arith.addi %9, %arg2 : i32
    %c256_i32 = arith.constant 256 : i32
    %11 = arith.muli %10, %c256_i32 : i32
    %12 = tpu.iota {dimensions = array<i32: 1>} : vector<1x256xi32>
    %13 = vector.broadcast %11 : i32 to vector<1x256xi32>
    %14 = arith.addi %13, %12 : vector<1x256xi32>
    %c256_i32_9 = arith.constant 256 : i32
    %15 = vector.broadcast %c256_i32_9 : i32 to vector<1x256xi32>
    %16 = arith.cmpi slt, %14, %15 : vector<1x256xi32>
    %c-100_i32 = arith.constant -100 : i32
    %17 = vector.broadcast %c-100_i32 : i32 to vector<1x256xi32>
    %18 = arith.cmpi ne, %8, %17 : vector<1x256xi32>
    %19 = arith.andi %16, %18 : vector<1x256xi1>
    %cst = arith.constant dense<0xFF800000> : vector<256xf32>
    %20 = vector.multi_reduction <maximumf>, %4, %cst [0] : vector<4x256xf32> to vector<256xf32>
    %21 = vector.shape_cast %20 : vector<256xf32> to vector<1x256xf32>
    %22 = vector.broadcast %21 : vector<1x256xf32> to vector<4x256xf32>
    %23 = arith.subf %4, %22 : vector<4x256xf32>
    %24 = math.exp %23 : vector<4x256xf32>
    %cst_10 = arith.constant dense<0.000000e+00> : vector<256xf32>
    %25 = vector.multi_reduction <add>, %24, %cst_10 [0] : vector<4x256xf32> to vector<256xf32>
    %26 = vector.shape_cast %25 : vector<256xf32> to vector<1x256xf32>
    %27 = math.log %26 : vector<1x256xf32>
    %28 = tpu.iota {dimensions = array<i32: 0>} : vector<4x256xi32>
    %cst_11 = arith.constant dense<0.000000e+00> : vector<256xf32>
    %29 = vector.multi_reduction <add>, %4, %cst_11 [0] : vector<4x256xf32> to vector<256xf32>
    %30 = vector.shape_cast %29 : vector<256xf32> to vector<1x256xf32>
    %31 = vector.broadcast %8 : vector<1x256xi32> to vector<4x256xi32>
    %32 = arith.cmpi eq, %28, %31 : vector<4x256xi32>
    %cst_12 = arith.constant 0.000000e+00 : f32
    %33 = vector.broadcast %cst_12 : f32 to vector<4x256xf32>
    %34 = arith.select %32, %4, %33 : vector<4x256xi1>, vector<4x256xf32>
    %cst_13 = arith.constant dense<0.000000e+00> : vector<256xf32>
    %35 = vector.multi_reduction <add>, %34, %cst_13 [0] : vector<4x256xf32> to vector<256xf32>
    %36 = vector.shape_cast %35 : vector<256xf32> to vector<1x256xf32>
    %cst_14 = arith.constant 2.500000e-02 : f32
    %37 = vector.broadcast %cst_14 : f32 to vector<1x256xf32>
    %38 = arith.mulf %37, %30 : vector<1x256xf32>
    %cst_15 = arith.constant 0.899999976 : f32
    %39 = vector.broadcast %cst_15 : f32 to vector<1x256xf32>
    %40 = arith.mulf %39, %36 : vector<1x256xf32>
    %41 = arith.addf %38, %40 : vector<1x256xf32>
    %42 = arith.addf %21, %27 : vector<1x256xf32>
    %43 = arith.subf %42, %41 : vector<1x256xf32>
    %44 = arith.mulf %6, %43 : vector<1x256xf32>
    %c0_16 = arith.constant 0 : index
    %c0_17 = arith.constant 0 : index
    %c0_18 = arith.constant 0 : index
    %45 = vector.load %arg6[%c0_16, %c0_17, %c0_18] : memref<1x1x256xf32, #tpu.memory_space<vmem>>, vector<1x1x256xf32>
    %46 = vector.shape_cast %45 : vector<1x1x256xf32> to vector<1x256xf32>
    %cst_19 = arith.constant 0.000000e+00 : f32
    %47 = vector.broadcast %cst_19 : f32 to vector<1x256xf32>
    %48 = arith.select %19, %44, %47 : vector<1x256xi1>, vector<1x256xf32>
    %49 = arith.addf %46, %48 : vector<1x256xf32>
    %c0_20 = arith.constant 0 : index
    %c0_21 = arith.constant 0 : index
    %c0_22 = arith.constant 0 : index
    %50 = vector.load %arg6[%c0_20, %c0_21, %c0_22] : memref<1x1x256xf32, #tpu.memory_space<vmem>>, vector<1x1x256xf32>
    %51 = vector.shape_cast %50 : vector<1x1x256xf32> to vector<1x256xf32>
    %52 = vector.shape_cast %49 : vector<1x256xf32> to vector<1x1x256xf32>
    tpu.vector_store %arg6[%c0_20, %c0_21, %c0_22], %52 {strides = array<i32>} : memref<1x1x256xf32, #tpu.memory_space<vmem>>, vector<1x1x256xf32>,
    return
  }
  func.func @transform_0(%arg0: i32, %arg1: i32, %arg2: i32) -> (i32, i32, i32) {
    %c1_i32 = arith.constant 1 : i32
    %0 = arith.muli %arg1, %c1_i32 : i32
    %1 = arith.addi %0, %arg2 : i32
    %c0_i32 = arith.constant 0 : i32
    %c0_i32_0 = arith.constant 0 : i32
    return %arg0, %c0_i32, %1 : i32, i32, i32
  }
  func.func @transform_1(%arg0: i32, %arg1: i32, %arg2: i32) -> (i32, i32, i32) {
    %c1_i32 = arith.constant 1 : i32
    %0 = arith.muli %arg1, %c1_i32 : i32
    %1 = arith.addi %0, %arg2 : i32
    %c0_i32 = arith.constant 0 : i32
    %c0_i32_0 = arith.constant 0 : i32
    return %arg0, %c0_i32, %1 : i32, i32, i32
  }
  func.func @transform_2(%arg0: i32, %arg1: i32, %arg2: i32) -> (i32, i32, i32) {
    %c1_i32 = arith.constant 1 : i32
    %0 = arith.muli %arg1, %c1_i32 : i32
    %1 = arith.addi %0, %arg2 : i32
    %c0_i32 = arith.constant 0 : i32
    %c0_i32_0 = arith.constant 0 : i32
    return %arg0, %c0_i32, %1 : i32, i32, i32
  }
  func.func @transform_3(%arg0: i32, %arg1: i32, %arg2: i32) -> (i32, i32, i32) {
    %c0_i32 = arith.constant 0 : i32
    %c0_i32_0 = arith.constant 0 : i32
    return %arg0, %arg1, %c0_i32 : i32, i32, i32
  }
}

</mosaic_0001>

<llo_original>
// kernel: tpu_custom_call.1
$region0: #{tpu_custom_call.1}
  #allocation0 [shape = 'u32[]', space=smem, size = 0x4, offset = 0x4, fixed_abs, tag = 'smem constant byte address 0x4 - core index']
  #allocation1 [shape = 'u32[144,128]{1,0:T(1,128)}', space=vmem, size = 0x12000, scoped, tag = 'internal scratch']
  %s0 = inlined_call_operand.hbm [shape: f32[2,4,256], index: 0, kind: input, shape index: {}]
  %s1 = inlined_call_operand.hbm [shape: s32[2,1,256], index: 1, kind: input, shape index: {}]
  %s2 = inlined_call_operand.hbm [shape: f32[2,1,256], index: 2, kind: input, shape index: {}]
  %s3 = inlined_call_operand.hbm [shape: f32[2,1,256], index: 3, kind: output, shape index: {}]
  %s4 = sld [smem:[#allocation0]]
  $region61: #{tpu_custom_call.1} parent=0
    _
  %s6 = ssub.s32 1, %s4
  %s7 = scalar_select 0, %s6, %s4
  $region1: #{tpu_custom_call.1} parent=0
    #allocation2 [shape = 'u8[8192]{0}', space=vmem, size = 0x2000, scoped, tag = 'input window, operand 0']
    #allocation3 [shape = 's32[2]{0}', space=sflag, size = 0x8, scoped, tag = 'scoped memory for tpu_custom_call.1']
    #allocation4 [shape = 's32[2]{0}', space=sflag, size = 0x8, scoped, tag = 'scoped memory for tpu_custom_call.1']
    #allocation5 [shape = 'u8[2048]{0}', space=vmem, size = 0x800, scoped, tag = 'input window, operand 1']
    #allocation6 [shape = 's32[2]{0}', space=sflag, size = 0x8, scoped, tag = 'scoped memory for tpu_custom_call.1']
    #allocation7 [shape = 'u8[2048]{0}', space=vmem, size = 0x800, scoped, tag = 'input window, operand 2']
    #allocation8 [shape = 'u8[2048]{0}', space=vmem, size = 0x800, scoped, tag = 'output window, operand 0']
    %8 = vsyncpa [#allocation3], 0
    %s9 = scalar_lea.sflag [#allocation3], 1
    %10 = vsyncpa %s9, 0
    %11 = vsyncpa [#allocation6], 0
    %s12 = scalar_lea.sflag [#allocation6], 1
    %13 = vsyncpa %s12, 0
    %14 = vsyncpa [#allocation4], 0
    %s15 = scalar_lea.sflag [#allocation4], 1
    %16 = vsyncpa %s15, 0
    loop: start=0, step=1, limit=4
    $region2: #{tpu_custom_call.1} parent=1 // loop_pre_header
      _
    $region3: #{tpu_custom_call.1} parent=1 // loop_header
      %s18 = sphi 0, %s22
      %p19 = scmp.ge.s32.totalorder %s18, 4
      %s25 = sphi 0, %s44
      %s26 = sphi 0, %s40
      %s27 = sphi 0, %s36
      %s28 = sphi 0, %s25
      %s29 = sphi 0, %s26
      %s30 = sphi 0, %s27
      %s31 = sphi 0, %s28
      %s32 = sphi 0, %s29
      %s33 = sphi 0, %s30
      %s51 = sphi 0, %s53
      %s54 = sphi 0, %s51
      %s55 = sphi 0, %s54
      %s71 = sphi 0, %s55
      %s81 = sphi 0, %s83
      %s84 = sphi 0, %s81
      %s85 = sphi 0, %s84
      %s101 = sphi 0, %s85
      %s111 = sphi 0, %s113
      %s114 = sphi 0, %s111
      %s115 = sphi 0, %s114
      %s131 = sphi 0, %s115
      %s139 = sphi 0, %s141
      %s142 = sphi 0, %s139
      %s143 = sphi 0, %s142
      %s159 = sphi 0, %s143
    $region4: #{tpu_custom_call.1} parent=1 // loop_header_branch
      %21 = sbr.rel (%p19) target = $region8
    $region5: #{tpu_custom_call.1} parent=1 // loop_body
      %s23 = ssub.s32 %s18, 1
      %s24 = ssub.s32 %s18, 2
      %s34 = sadd.s32 1, %s27
      %p35 = scmp.ge.s32.totalorder %s34, 1
      %s36 = scalar_select %p35, 0, %s34
      %s37 = sadd.s32 1, %s26
      %s38 = scalar_select %p35, %s37, %s26
      %p39 = scmp.ge.s32.totalorder %s38, 1
      %s40 = scalar_select %p39, 0, %s38
      %s41 = sadd.s32 1, %s25
      %s42 = scalar_select %p39, %s41, %s25
      %p43 = scmp.ge.s32.totalorder %s42, 2
      %s44 = scalar_select %p43, 0, %s42
      %s45 = sadd.s32 %s26, %s27
      %s46 = sadd.s32 %s40, %s36
      %s47 = ssub.s32 %s25, %s44
      %s48 = ssub.s32 %s45, %s46
      %s49 = sor.u32 %s47, %s48
      %p50 = scmp.eq.s32.totalorder %s49, 0
      %s52 = sadd.s32 %s51, 1
      %s53 = scalar_select %p50, %s51, %s52
      %p56 = pneg %p50
      %p57 = scmp.eq.s32.totalorder %s18, 1
      %p58 = por %p56, %p57
      %p59 = scmp.ne.s32.totalorder %s51, %s54
      %p60 = scmp.eq.s32.totalorder %s18, 0
      %p61 = por %p59, %p60
      %p62 = scmp.ne.s32.totalorder %s51, %s54
      %p63 = scmp.eq.s32.totalorder %s23, 1
      %p64 = por %p62, %p63
      %p65 = scmp.ne.s32.totalorder %s54, %s55
      %p66 = scmp.eq.s32.totalorder %s23, 0
      %p67 = por %p65, %p66
      %p68 = scmp.ne.s32.totalorder %s54, %s55
      %p69 = scmp.eq.s32.totalorder %s24, 1
      %p70 = por %p68, %p69
      %p72 = scmp.ne.s32.totalorder %s55, %s71
      %p73 = scmp.eq.s32.totalorder %s24, 0
      %p74 = por %p72, %p73
      %s75 = sadd.s32 %s26, %s27
      %s76 = sadd.s32 %s40, %s36
      %s77 = ssub.s32 %s25, %s44
      %s78 = ssub.s32 %s75, %s76
      %s79 = sor.u32 %s77, %s78
      %p80 = scmp.eq.s32.totalorder %s79, 0
      %s82 = sadd.s32 %s81, 1
      %s83 = scalar_select %p80, %s81, %s82
      %p86 = pneg %p80
      %p87 = scmp.eq.s32.totalorder %s18, 1
      %p88 = por %p86, %p87
      %p89 = scmp.ne.s32.totalorder %s81, %s84
      %p90 = scmp.eq.s32.totalorder %s18, 0
      %p91 = por %p89, %p90
      %p92 = scmp.ne.s32.totalorder %s81, %s84
      %p93 = scmp.eq.s32.totalorder %s23, 1
      %p94 = por %p92, %p93
      %p95 = scmp.ne.s32.totalorder %s84, %s85
      %p96 = scmp.eq.s32.totalorder %s23, 0
      %p97 = por %p95, %p96
      %p98 = scmp.ne.s32.totalorder %s84, %s85
      %p99 = scmp.eq.s32.totalorder %s24, 1
      %p100 = por %p98, %p99
      %p102 = scmp.ne.s32.totalorder %s85, %s101
      %p103 = scmp.eq.s32.totalorder %s24, 0
      %p104 = por %p102, %p103
      %s105 = sadd.s32 %s26, %s27
      %s106 = sadd.s32 %s40, %s36
      %s107 = ssub.s32 %s25, %s44
      %s108 = ssub.s32 %s105, %s106
      %s109 = sor.u32 %s107, %s108
      %p110 = scmp.eq.s32.totalorder %s109, 0
      %s112 = sadd.s32 %s111, 1
      %s113 = scalar_select %p110, %s111, %s112
      %p116 = pneg %p110
      %p117 = scmp.eq.s32.totalorder %s18, 1
      %p118 = por %p116, %p117
      %p119 = scmp.ne.s32.totalorder %s111, %s114
      %p120 = scmp.eq.s32.totalorder %s18, 0
      %p121 = por %p119, %p120
      %p122 = scmp.ne.s32.totalorder %s111, %s114
      %p123 = scmp.eq.s32.totalorder %s23, 1
      %p124 = por %p122, %p123
      %p125 = scmp.ne.s32.totalorder %s114, %s115
      %p126 = scmp.eq.s32.totalorder %s23, 0
      %p127 = por %p125, %p126
      %p128 = scmp.ne.s32.totalorder %s114, %s115
      %p129 = scmp.eq.s32.totalorder %s24, 1
      %p130 = por %p128, %p129
      %p132 = scmp.ne.s32.totalorder %s115, %s131
      %p133 = scmp.eq.s32.totalorder %s24, 0
      %p134 = por %p132, %p133
      %s135 = ssub.s32 %s25, %s44
      %s136 = ssub.s32 %s26, %s40
      %s137 = sor.u32 %s135, %s136
      %p138 = scmp.eq.s32.totalorder %s137, 0
      %s140 = sadd.s32 %s139, 1
      %s141 = scalar_select %p138, %s139, %s140
      %p144 = pneg %p138
      %p145 = scmp.eq.s32.totalorder %s18, 1
      %p146 = por %p144, %p145
      %p147 = scmp.ne.s32.totalorder %s139, %s142
      %p148 = scmp.eq.s32.totalorder %s18, 0
      %p149 = por %p147, %p148
      %p150 = scmp.ne.s32.totalorder %s139, %s142
      %p151 = scmp.eq.s32.totalorder %s23, 1
      %p152 = por %p150, %p151
      %p153 = scmp.ne.s32.totalorder %s142, %s143
      %p154 = scmp.eq.s32.totalorder %s23, 0
      %p155 = por %p153, %p154
      %p156 = scmp.ne.s32.totalorder %s142, %s143
      %p157 = scmp.eq.s32.totalorder %s24, 1
      %p158 = por %p156, %p157
      %p160 = scmp.ne.s32.totalorder %s143, %s159
      %p161 = scmp.eq.s32.totalorder %s24, 0
      %p162 = por %p160, %p161
      %p163 = scmp.le.s32.totalorder 1, %s18
      %p164 = scmp.lt.s32.totalorder %s18, 3
      %p165 = pnand %p163, %p164
      %p166 = pneg %p165
      // Predicated region
      $region9: #{tpu_custom_call.1} parent=5 // pred_check
        _
      $region10: #{tpu_custom_call.1} parent=5 // pred_check_branch
        %168 = sbr.rel (%p165) target = $region12
      $region11: #{tpu_custom_call.1} parent=5 // pred_region
        %s169 = ssub.s32 %s18, 1
      $region12: #{tpu_custom_call.1} parent=5 // pred_fallthru
        _
      %p170 = scmp.lt.s32.totalorder %s18, 2
      // Predicated region
      $region13: #{tpu_custom_call.1} parent=5 // pred_check
        %p171 = pneg %p170
      $region14: #{tpu_custom_call.1} parent=5 // pred_check_branch
        %173 = sbr.rel (%p171) target = $region16
      $region15: #{tpu_custom_call.1} parent=5 // pred_region
        // Predicated region
        $region17: #{tpu_custom_call.1} parent=15 // pred_check
          %p174 = pneg %p61
        $region18: #{tpu_custom_call.1} parent=15 // pred_check_branch
          %176 = sbr.rel (%p174) target = $region20
        $region19: #{tpu_custom_call.1} parent=15 // pred_region
          %s177 = sand.u32 %s51, 1
          %s178 = scalar_lea.sflag [#allocation3], %s177
          %s179 = sand.u32 %s51, 1
          %s180 = smul.addr %s179, 8
          %s181 = scalar_lea.vmem [#allocation2], %s180
          %s182 = sadd.s32 %s26, %s27
          %s183 = smul.u32 2, %s182
          %s185 = ssub.s32 128, 128
          %186 = vsyncadd %s178, %s185
          %s187 = smul.addr %s25, 2
          %s188 = sadd.s32 %s183, %s187
          %s189 = smul.addr %s188, 64
          %s190 = scalar_lea.hbm %s0, %s189
          %s192 = sshll.u32 %s181, 4
          %s193 = int_to_ptr.vmem [resolvable:$true] %s192
          %195 = dma.hbm_to_vmem [thread:$0]  %s190, 128, %s193, %s178
        $region20: #{tpu_custom_call.1} parent=15 // pred_fallthru
          _
        // Predicated region
        $region21: #{tpu_custom_call.1} parent=15 // pred_check
          %p196 = pneg %p91
        $region22: #{tpu_custom_call.1} parent=15 // pred_check_branch
          %198 = sbr.rel (%p196) target = $region24
        $region23: #{tpu_custom_call.1} parent=15 // pred_region
          %s199 = sand.u32 %s18, 1
          %s200 = scalar_lea.sflag [#allocation6], %s199
          %s201 = sand.u32 %s81, 1
          %s202 = smul.addr %s201, 2
          %s203 = scalar_lea.vmem [#allocation5], %s202
          %s204 = sadd.s32 %s26, %s27
          %s205 = smul.u32 2, %s204
          %s207 = ssub.s32 32, 32
          %208 = vsyncadd %s200, %s207
          %s209 = smul.addr %s25, 2
          %s210 = sadd.s32 %s205, %s209
          %s211 = smul.addr %s210, 16
          %s212 = scalar_lea.hbm %s1, %s211
          %s214 = sshll.u32 %s203, 4
          %s215 = int_to_ptr.vmem [resolvable:$true] %s214
          %217 = dma.hbm_to_vmem [thread:$0]  %s212, 32, %s215, %s200
        $region24: #{tpu_custom_call.1} parent=15 // pred_fallthru
          _
        // Predicated region
        $region25: #{tpu_custom_call.1} parent=15 // pred_check
          %p218 = pneg %p121
        $region26: #{tpu_custom_call.1} parent=15 // pred_check_branch
          %220 = sbr.rel (%p218) target = $region28
        $region27: #{tpu_custom_call.1} parent=15 // pred_region
          %s221 = sand.u32 %s18, 1
          %s222 = scalar_lea.sflag [#allocation6], %s221
          %s223 = sand.u32 %s111, 1
          %s224 = smul.addr %s223, 2
          %s225 = scalar_lea.vmem [#allocation7], %s224
          %s226 = sadd.s32 %s26, %s27
          %s227 = smul.u32 2, %s226
          %s229 = ssub.s32 32, 32
          %230 = vsyncadd %s222, %s229
          %s231 = smul.addr %s25, 2
          %s232 = sadd.s32 %s227, %s231
          %s233 = smul.addr %s232, 16
          %s234 = scalar_lea.hbm %s2, %s233
          %s236 = sshll.u32 %s225, 4
          %s237 = int_to_ptr.vmem [resolvable:$true] %s236
          %239 = dma.hbm_to_vmem [thread:$0]  %s234, 32, %s237, %s222
        $region28: #{tpu_custom_call.1} parent=15 // pred_fallthru
          _
      $region16: #{tpu_custom_call.1} parent=5 // pred_fallthru
        _
      %p240 = scmp.le.s32.totalorder 1, %s18
      %p241 = scmp.lt.s32.totalorder %s18, 3
      %p242 = pnand %p240, %p241
      %p243 = pneg %p242
      // Predicated region
      $region29: #{tpu_custom_call.1} parent=5 // pred_check
        _
      $region30: #{tpu_custom_call.1} parent=5 // pred_check_branch
        %245 = sbr.rel (%p242) target = $region32
      $region31: #{tpu_custom_call.1} parent=5 // pred_region
        %s246 = ssub.s32 %s18, 1
        %s247 = sand.u32 %s54, 1
        %s248 = scalar_lea.sflag [#allocation3], %s247
        %s249 = sand.u32 %s54, 1
        %s250 = smul.addr %s249, 8
        %s251 = scalar_lea.vmem [#allocation2], %s250
        // Predicated region
        $region33: #{tpu_custom_call.1} parent=31 // pred_check
          %p252 = pneg %p67
        $region34: #{tpu_custom_call.1} parent=31 // pred_check_branch
          %254 = sbr.rel (%p252) target = $region36
        $region35: #{tpu_custom_call.1} parent=31 // pred_region
          %255 = dma.done %s248, 128
        $region36: #{tpu_custom_call.1} parent=31 // pred_fallthru
          _
        %s256 = sand.u32 %s23, 1
        %s257 = scalar_lea.sflag [#allocation6], %s256
        %s258 = sand.u32 %s84, 1
        %s259 = smul.addr %s258, 2
        %s260 = scalar_lea.vmem [#allocation5], %s259
        // Predicated region
        $region37: #{tpu_custom_call.1} parent=31 // pred_check
          %p261 = pneg %p97
        $region38: #{tpu_custom_call.1} parent=31 // pred_check_branch
          %263 = sbr.rel (%p261) target = $region40
        $region39: #{tpu_custom_call.1} parent=31 // pred_region
          %264 = dma.done %s257, 32
        $region40: #{tpu_custom_call.1} parent=31 // pred_fallthru
          _
        %s265 = sand.u32 %s23, 1
        %s266 = scalar_lea.sflag [#allocation6], %s265
        %s267 = sand.u32 %s114, 1
        %s268 = smul.addr %s267, 2
        %s269 = scalar_lea.vmem [#allocation7], %s268
        // Predicated region
        $region41: #{tpu_custom_call.1} parent=31 // pred_check
          %p270 = pneg %p127
        $region42: #{tpu_custom_call.1} parent=31 // pred_check_branch
          %272 = sbr.rel (%p270) target = $region44
        $region43: #{tpu_custom_call.1} parent=31 // pred_region
          %273 = dma.done %s266, 32
        $region44: #{tpu_custom_call.1} parent=31 // pred_fallthru
          _
        %s274 = sand.u32 %s54, 1
        %s275 = scalar_lea.sflag [#allocation3], %s274
        %s276 = sand.u32 %s54, 1
        %s277 = smul.addr %s276, 8
        %s278 = scalar_lea.vmem [#allocation2], %s277
        %p279 = pneg %p67
        %p280 = pneg %p64
        %s281 = sand.u32 %s23, 1
        %s282 = scalar_lea.sflag [#allocation6], %s281
        %s283 = sand.u32 %s84, 1
        %s284 = smul.addr %s283, 2
        %s285 = scalar_lea.vmem [#allocation5], %s284
        %p286 = pneg %p97
        %p287 = pneg %p94
        %s288 = sand.u32 %s23, 1
        %s289 = scalar_lea.sflag [#allocation6], %s288
        %s290 = sand.u32 %s114, 1
        %s291 = smul.addr %s290, 2
        %s292 = scalar_lea.vmem [#allocation7], %s291
        %p293 = pneg %p127
        %p294 = pneg %p124
        %p295 = pneg %p155
        %p296 = pneg %p152
        %s297 = sand.u32 %s142, 1
        %s298 = scalar_lea.sflag [#allocation4], %s297
        %s299 = sand.u32 %s142, 1
        %s300 = smul.addr %s299, 2
        %s301 = scalar_lea.vmem [#allocation8], %s300
        %s302 = sadd.s32 %s29, %s30
        %s303 = smul.u32 2, %s302
        %s304 = sadd.s32 %s29, %s30
        %s305 = smul.u32 2, %s304
        %s306 = sadd.s32 %s29, %s30
        %s307 = smul.u32 2, %s306
        %p308 = scmp.eq.s32.totalorder %s30, 0
        // Predicated region
        $region45: #{tpu_custom_call.1} parent=31 // pred_check
          %p309 = pneg %p308
        $region46: #{tpu_custom_call.1} parent=31 // pred_check_branch
          %311 = sbr.rel (%p309) target = $region48
        $region47: #{tpu_custom_call.1} parent=31 // pred_region
          %v312 = vlaneseq
          %vm313 = vcmp.ge.s32.totalorder %v312, 0
          %vm314 = vcmp.lt.s32.totalorder %v312, 256
          %vm315 = vmand %vm313, %vm314
          %316 = vst.msk [vmem:[%s301] sm:$0x3] %vm315, 0.0
        $region48: #{tpu_custom_call.1} parent=31 // pred_fallthru
          _
        %v317 = vld [vmem:[%s251] sm:$0xff]
        %v318 = vld [vmem:[%s269] sm:$0x3]
        %v319 = vld [vmem:[%s260] sm:$0x3]
        %s320 = sadd.s32 %s29, %s30
        %s321 = smul.u32 %s320, 256
        %v322 = vlaneseq
        %v323 = vand.u32 %v322, 127
        %v324 = vadd.s32 %v323, 128
        %v325 = vstv %s321
        %v326 = vadd.s32 %v325, %v323
        %v327 = vadd.s32 %v325, %v324
        %vm328 = vcmp.lt.s32.totalorder %v326, 256
        %vm329 = vcmp.lt.s32.totalorder %v327, 256
        %vm330 = vcmp.ne.s32.totalorder %v319, 4294967196
        %v331 = vsel %vm330, 1, 0
        %v332 = vlaneseq
        %v333 = vshrl.u32 %v332, 7
        %v334 = vsub.s32 0, %v333
        %v335 = vrot.slane %v331, %v334
        %v336 = vlaneseq
        %v337 = vshrl.u32 %v336, 7
        %v338 = vsub.s32 1, %v337
        %v339 = vrot.slane %v331, %v338
        %vm340 = vcmp.ne.s32.totalorder %v335, 0
        %vm341 = vcmp.ne.s32.totalorder %v339, 0
        %vm342 = vmand %vm328, %vm340
        %vm343 = vmand %vm329, %vm341
        %v345 = vcombine.high %v317, %v317
        %vm347 = vcmask 1043456
        %v348 = vsel %vm347, %v317, -inf
        %v349 = vrot.slane %v348, 4
        %v350 = vmax.f32 %v348, %v349
        %v351 = vrot.slane %v350, 2
        %v352 = vmax.f32 %v350, %v351
        %v353 = vrot.slane %v352, 1
        %v354 = vmax.f32 %v352, %v353
        %v355 = vsel %vm347, %v345, -inf
        %v356 = vrot.slane %v355, 4
        %v357 = vmax.f32 %v355, %v356
        %v358 = vrot.slane %v357, 2
        %v359 = vmax.f32 %v357, %v358
        %v360 = vrot.slane %v359, 1
        %v361 = vmax.f32 %v359, %v360
        %v364 = vcombine.low %v354, %v361
        %v366 = vsub.f32 %v317, %v364
        %v367 = vmul.f32 %v366, 1.442695
        %v368 = vpow.pop %v367
        %v370 = vcombine.high %v368, %v368
        %v372 = vsel %vm347, %v368, 0.0
        %v373 = vrot.slane %v372, 4
        %v374 = vadd.f32 %v372, %v373
        %v375 = vrot.slane %v374, 2
        %v376 = vadd.f32 %v374, %v375
        %v377 = vrot.slane %v376, 1
        %v378 = vadd.f32 %v376, %v377
        %v379 = vsel %vm347, %v370, 0.0
        %v380 = vrot.slane %v379, 4
        %v381 = vadd.f32 %v379, %v380
        %v382 = vrot.slane %v381, 2
        %v383 = vadd.f32 %v381, %v382
        %v384 = vrot.slane %v383, 1
        %v385 = vadd.f32 %v383, %v384
        %v386 = vlog2.pop %v378
        %v387 = vmul.f32 %v386, 0.6931472
        %v388 = vlog2.pop %v385
        %v389 = vmul.f32 %v388, 0.6931472
        %v390 = vlaneseq
        %v391 = vshrl.u32 %v390, 7
        %v392 = vsel %vm347, %v317, 0.0
        %v393 = vrot.slane %v392, 4
        %v394 = vadd.f32 %v392, %v393
        %v395 = vrot.slane %v394, 2
        %v396 = vadd.f32 %v394, %v395
        %v397 = vrot.slane %v396, 1
        %v398 = vadd.f32 %v396, %v397
        %v399 = vsel %vm347, %v345, 0.0
        %v400 = vrot.slane %v399, 4
        %v401 = vadd.f32 %v399, %v400
        %v402 = vrot.slane %v401, 2
        %v403 = vadd.f32 %v401, %v402
        %v404 = vrot.slane %v403, 1
        %v405 = vadd.f32 %v403, %v404
        %v406 = vlaneseq
        %v407 = vshrl.u32 %v406, 7
        %v408 = vsub.s32 0, %v407
        %v409 = vrot.slane %v319, %v408
        %v410 = vlaneseq
        %v411 = vshrl.u32 %v410, 7
        %v412 = vsub.s32 1, %v411
        %v413 = vrot.slane %v319, %v412
        %vm414 = vcmp.eq.s32.totalorder %v391, %v409
        %vm415 = vcmp.eq.s32.totalorder %v391, %v413
        %v416 = vsel %vm414, %v317, 0.0
        %v417 = vsel %vm415, %v345, 0.0
        %v418 = vsel %vm347, %v416, 0.0
        %v419 = vrot.slane %v418, 4
        %v420 = vadd.f32 %v418, %v419
        %v421 = vrot.slane %v420, 2
        %v422 = vadd.f32 %v420, %v421
        %v423 = vrot.slane %v422, 1
        %v424 = vadd.f32 %v422, %v423
        %v425 = vsel %vm347, %v417, 0.0
        %v426 = vrot.slane %v425, 4
        %v427 = vadd.f32 %v425, %v426
        %v428 = vrot.slane %v427, 2
        %v429 = vadd.f32 %v427, %v428
        %v430 = vrot.slane %v429, 1
        %v431 = vadd.f32 %v429, %v430
        %v432 = vmul.f32 %v398, 0.025
        %v433 = vmul.f32 %v405, 0.025
        %v434 = vmul.f32 %v424, 0.9
        %v435 = vmul.f32 %v431, 0.9
        %v436 = vadd.f32 %v432, %v434
        %v437 = vadd.f32 %v433, %v435
        %v438 = vadd.f32 %v354, %v387
        %v439 = vadd.f32 %v361, %v389
        %v440 = vsub.f32 %v438, %v436
        %v441 = vsub.f32 %v439, %v437
        %v444 = vcombine.low %v440, %v441
        %v446 = vunpack.c.l.s4 1966171168
        %v447 = vunpack.c.0.s8 %v446
        %v448 = vlaneseq
        %v449 = vshrl.u32 %v448, 7
        %v450 = vsub.s32 %v447, %v449
        %v451 = vrot.slane %v444, %v450
        %v453 = vunpack.c.l.s4 1966171168
        %v454 = vunpack.c.0.s8 %v453
        %v455 = vlaneseq
        %v456 = vshrl.u32 %v455, 7
        %v457 = vsub.s32 %v454, %v456
        %v458 = vrot.slane %v451, %v457
        %v460 = vmul.f32 %v318, %v458
        %v461 = vld [vmem:[%s301] sm:$0x3]
        %v463 = vlaneseq
        %v464 = vshrl.u32 %v463, 7
        %v465 = vsub.s32 0, %v464
        %v466 = vrot.slane %v460, %v465
        %v467 = vlaneseq
        %v468 = vshrl.u32 %v467, 7
        %v469 = vsub.s32 1, %v468
        %v470 = vrot.slane %v460, %v469
        %v473 = vsel %vm342, %v466, 0.0
        %v474 = vsel %vm343, %v470, 0.0
        %v477 = vcombine.low %v473, %v474
        %v479 = vunpack.c.l.s4 1966171168
        %v480 = vunpack.c.0.s8 %v479
        %v481 = vlaneseq
        %v482 = vshrl.u32 %v481, 7
        %v483 = vsub.s32 %v480, %v482
        %v484 = vrot.slane %v477, %v483
        %v486 = vunpack.c.l.s4 1966171168
        %v487 = vunpack.c.0.s8 %v486
        %v488 = vlaneseq
        %v489 = vshrl.u32 %v488, 7
        %v490 = vsub.s32 %v487, %v489
        %v491 = vrot.slane %v484, %v490
        %v493 = vadd.f32 %v461, %v491
        %v494 = vlaneseq
        %vm495 = vcmp.ge.s32.totalorder %v494, 0
        %vm496 = vcmp.lt.s32.totalorder %v494, 256
        %vm497 = vmand %vm495, %vm496
        %498 = vst.msk [vmem:[%s301] sm:$0x3] %vm497, %v493
        %s499 = sand.u32 %s142, 1
        %s500 = scalar_lea.sflag [#allocation4], %s499
        %s501 = sand.u32 %s142, 1
        %s502 = smul.addr %s501, 2
        %s503 = scalar_lea.vmem [#allocation8], %s502
        // Predicated region
        $region49: #{tpu_custom_call.1} parent=31 // pred_check
          %p504 = pneg %p152
        $region50: #{tpu_custom_call.1} parent=31 // pred_check_branch
          %506 = sbr.rel (%p504) target = $region52
        $region51: #{tpu_custom_call.1} parent=31 // pred_region
          %s508 = ssub.s32 32, 32
          %509 = vsyncadd %s500, %s508
          %s510 = smul.addr %s29, 2
          %s511 = smul.addr %s28, 2
          %s512 = sadd.s32 %s510, %s511
          %s513 = smul.addr %s512, 16
          %s514 = scalar_lea.hbm %s3, %s513
          %s516 = sshll.u32 %s503, 4
          %s517 = int_to_ptr.vmem [resolvable:$true] %s516
          %519 = dma.vmem_to_hbm [thread:$0]  %s517, 32, %s514, %s500
        $region52: #{tpu_custom_call.1} parent=31 // pred_fallthru
          _
      $region32: #{tpu_custom_call.1} parent=5 // pred_fallthru
        _
      %p520 = scmp.le.s32.totalorder 2, %s18
      // Predicated region
      $region53: #{tpu_custom_call.1} parent=5 // pred_check
        %p521 = pneg %p520
      $region54: #{tpu_custom_call.1} parent=5 // pred_check_branch
        %523 = sbr.rel (%p521) target = $region56
      $region55: #{tpu_custom_call.1} parent=5 // pred_region
        %s524 = ssub.s32 %s18, 2
        // Predicated region
        $region57: #{tpu_custom_call.1} parent=55 // pred_check
          %p525 = pneg %p158
        $region58: #{tpu_custom_call.1} parent=55 // pred_check_branch
          %527 = sbr.rel (%p525) target = $region60
        $region59: #{tpu_custom_call.1} parent=55 // pred_region
          %s528 = sand.u32 %s143, 1
          %s529 = scalar_lea.sflag [#allocation4], %s528
          %s530 = sand.u32 %s143, 1
          %s531 = smul.addr %s530, 2
          %s532 = scalar_lea.vmem [#allocation8], %s531
          %533 = dma.done %s529, 32
        $region60: #{tpu_custom_call.1} parent=55 // pred_fallthru
          _
      $region56: #{tpu_custom_call.1} parent=5 // pred_fallthru
        _
    $region6: #{tpu_custom_call.1} parent=1 // loop_footer
      %s22 = sadd.s32 1, %s18
    $region7: #{tpu_custom_call.1} parent=1 // loop_footer_branch
      %17 = sbr.rel target = $region3
    $region8: #{tpu_custom_call.1} parent=1 // loop_exit
      _
    %534 = vsyncpa [#allocation3], 1
    %s535 = scalar_lea.sflag [#allocation3], 1
    %536 = vsyncpa %s535, 1
    %537 = vsyncpa [#allocation6], 1
    %s538 = scalar_lea.sflag [#allocation6], 1
    %539 = vsyncpa %s538, 1
    %540 = vsyncpa [#allocation4], 1
    %s541 = scalar_lea.sflag [#allocation4], 1
    %542 = vsyncpa %s541, 1

</llo_original>
